<compile_context>
chip_gen: v7x
topology: tpu7x:2x2x1
jax: 0.10.0
libtpu: 0.0.40
codegen_flags: <defaults>
</compile_context>

<pallas_src>
import jax
import jax.numpy as jnp
from jax.experimental import pallas as pl
from jax.experimental.pallas import tpu as pltpu


def _cdiv(a: int, b: int) -> int:
    return -(-a // b)


def _round_up(x: int, m: int) -> int:
    return ((x + m - 1) // m) * m


def fused_constrain_kernel(z_ref, at_ref, b_ref, c_ref, pivot_ref, o_ref):
    z = z_ref[...]            # (tn, D)  f32
    At = at_ref[...]          # (D, M)   f32, VMEM resident
    b = b_ref[...]            # (1, M)
    c = c_ref[...]            # (1, M)   = pivot @ At - b, precomputed
    pivot = pivot_ref[...]    # (1, D)

    # Single MXU matmul per tile.
    zAt = jnp.dot(z, At, preferred_element_type=jnp.float32)   # (tn, M)
    sign_arg = zAt - b                                          # (tn, M)
    ind = sign_arg >= 0.0                                       # (tn, M) bool

    # ray @ At == pivot@At - z@At == (pivot@At - b) - (z@At - b) = c - sign_arg
    denom = jnp.minimum(c - sign_arg, -1e-9)                    # (tn, M)
    # Exact f32 divide (approx reciprocal exceeded the 2e-3 tolerance).
    alpha = -sign_arg / denom                                   # (tn, M)

    # Masked row-max; 0 when no constraint is active, so common_ind is implied.
    masked = jnp.where(ind, alpha, 0.0)
    common_alpha = jnp.max(masked, axis=1, keepdims=True)       # (tn, 1)

    ray = pivot - z                                             # (tn, D)
    o_ref[...] = z + common_alpha * ray                         # (tn, D)


def simple_fused_constrain(z, A, b, pivot, *, row_tile=512):
    """z: (N, D), A: (M, D), b: (M,), pivot: (D,) -> (N, D)."""
    N, D = z.shape
    M = A.shape[0]

    z32 = jnp.asarray(z, jnp.float32)
    At = jnp.asarray(A, jnp.float32).T                 # (D, M)
    b_row = jnp.asarray(b, jnp.float32).reshape(1, M)  # (1, M)
    pivot_row = jnp.asarray(pivot, jnp.float32).reshape(1, D)
    c_row = pivot_row @ At - b_row                     # (1, M), tiny precompute

    # Tight row tiling: pick the number of grid steps first, then an 8-aligned
    # tile that covers N with minimal padding.
    G = max(1, _cdiv(N, row_tile))
    tn = max(8, _round_up(_cdiv(N, G), 8))
    Np = G * tn
    z_in = z32 if Np == N else jnp.zeros((Np, D), jnp.float32).at[:N].set(z32)

    out = pl.pallas_call(
        fused_constrain_kernel,
        out_shape=jax.ShapeDtypeStruct((Np, D), jnp.float32),
        grid_spec=pltpu.PrefetchScalarGridSpec(
            num_scalar_prefetch=0,
            grid=(G,),
            in_specs=[
                pl.BlockSpec((tn, D), lambda i: (i, 0)),  # z row tile (streamed)
                pl.BlockSpec((D, M), lambda i: (0, 0)),   # At (resident)
                pl.BlockSpec((1, M), lambda i: (0, 0)),   # b
                pl.BlockSpec((1, M), lambda i: (0, 0)),   # c = pivot@At - b
                pl.BlockSpec((1, D), lambda i: (0, 0)),   # pivot
            ],
            out_specs=pl.BlockSpec((tn, D), lambda i: (i, 0)),
        ),
        compiler_params=pltpu.CompilerParams(
            dimension_semantics=("parallel",)),
    )(z_in, At, b_row, c_row, pivot_row)

    return out if Np == N else out[:N]


def ref_forward(z, A, b, pivot):
    """Pure-JAX reference mirroring the PyTorch forward (exact f32 divide)."""
    At = A.T
    sign_arg = z @ At - b[None, :]
    ind = sign_arg >= 0
    ray = pivot[None, :] - z
    alpha = -sign_arg / jnp.minimum(ray @ At, -1e-9)
    common_alpha = jnp.max(alpha * ind.astype(jnp.float32), axis=1)
    common_ind = jnp.any(ind, axis=1)
    return z + common_ind[:, None].astype(jnp.float32) * (common_alpha[:, None] * ray)


def _make_problem(key, N, D, M):
    k_z, k_a, k_p, k_m = jax.random.split(key, 4)
    A = jax.random.normal(k_a, (M, D), dtype=jnp.float32)
    pivot = jax.random.normal(k_p, (D,), dtype=jnp.float32) * 0.1
    # Strictly interior pivot with a margin -> well-conditioned denominators.
    margin = jax.random.uniform(k_m, (M,), minval=0.5, maxval=1.5, dtype=jnp.float32)
    b = A @ pivot + margin
    z = jax.random.normal(k_z, (N, D), dtype=jnp.float32)
    return z, A, b, pivot


if __name__ == "__main__":
    key = jax.random.PRNGKey(0)
    k1, k2 = jax.random.split(key)

    # Small shapes consistent with the module (batch, features, constraints),
    # plus a larger batch that exercises the multi-tile / ragged-N path.
    for kk, (N, D, M) in ((k1, (16, 32, 24)), (k2, (1040, 32, 24))):
        z, A, b, pivot = _make_problem(kk, N, D, M)

        out = simple_fused_constrain(z, A, b, pivot)
        out = jax.block_until_ready(out)

        ref = ref_forward(z, A, b, pivot)
        assert out.shape == (N, D)
        assert jnp.allclose(out, ref, rtol=2e-3, atol=2e-3), (
            f"N={N}: max abs err {jnp.max(jnp.abs(out - ref))}")

    print("KERNEL_OK")
</pallas_src>

<mosaic_0001>
module attributes {stable_mosaic.version = 11 : i64} {
  func.func @fused_constrain_kernel(%arg0: i32, %arg1: memref<16x32xf32, #tpu.memory_space<vmem>>, %arg2: memref<32x24xf32, #tpu.memory_space<vmem>>, %arg3: memref<1x24xf32, #tpu.memory_space<vmem>>, %arg4: memref<1x24xf32, #tpu.memory_space<vmem>>, %arg5: memref<1x32xf32, #tpu.memory_space<vmem>>, %arg6: memref<16x32xf32, #tpu.memory_space<vmem>>) attributes {dimension_semantics = [#tpu.dimension_semantics<parallel>], iteration_bounds = array<i64: 1>, scalar_prefetch = 0 : i64, scratch_operands = 0 : i64, tpu.core_type = #tpu.core_type<tc>, window_params = [{transform_indices = @transform_0, window_bounds = array<i64: 16, 32>}, {pipeline_mode = #tpu.pipeline_mode<synchronous>, transform_indices = @transform_1, window_bounds = array<i64: 32, 24>}, {pipeline_mode = #tpu.pipeline_mode<synchronous>, transform_indices = @transform_2, window_bounds = array<i64: 1, 24>}, {pipeline_mode = #tpu.pipeline_mode<synchronous>, transform_indices = @transform_3, window_bounds = array<i64: 1, 24>}, {pipeline_mode = #tpu.pipeline_mode<synchronous>, transform_indices = @transform_4, window_bounds = array<i64: 1, 32>}, {transform_indices = @transform_5, window_bounds = array<i64: 16, 32>}]} {
    %c0 = arith.constant 0 : index
    %c0_0 = arith.constant 0 : index
    %0 = vector.load %arg1[%c0, %c0_0] : memref<16x32xf32, #tpu.memory_space<vmem>>, vector<16x32xf32>
    %c0_1 = arith.constant 0 : index
    %c0_2 = arith.constant 0 : index
    %1 = vector.load %arg2[%c0_1, %c0_2] : memref<32x24xf32, #tpu.memory_space<vmem>>, vector<32x24xf32>
    %c0_3 = arith.constant 0 : index
    %c0_4 = arith.constant 0 : index
    %2 = vector.load %arg3[%c0_3, %c0_4] : memref<1x24xf32, #tpu.memory_space<vmem>>, vector<1x24xf32>
    %c0_5 = arith.constant 0 : index
    %c0_6 = arith.constant 0 : index
    %3 = vector.load %arg4[%c0_5, %c0_6] : memref<1x24xf32, #tpu.memory_space<vmem>>, vector<1x24xf32>
    %c0_7 = arith.constant 0 : index
    %c0_8 = arith.constant 0 : index
    %4 = vector.load %arg5[%c0_7, %c0_8] : memref<1x32xf32, #tpu.memory_space<vmem>>, vector<1x32xf32>
    %cst = arith.constant dense<0.000000e+00> : vector<16x24xf32>
    %5 = tpu.matmul %0, %1, %cst {dimension_numbers = #tpu.dot_dimension_numbers<[1], [0], [0], [1], [0, 0, 1, 1], [], []>} : vector<16x32xf32>, vector<32x24xf32>, vector<16x24xf32> -> vector<16x24xf32>
    %6 = vector.broadcast %2 : vector<1x24xf32> to vector<16x24xf32>
    %7 = arith.subf %5, %6 : vector<16x24xf32>
    %cst_9 = arith.constant 0.000000e+00 : f32
    %8 = vector.broadcast %cst_9 : f32 to vector<16x24xf32>
    %9 = arith.cmpf oge, %7, %8 : vector<16x24xf32>
    %10 = vector.broadcast %3 : vector<1x24xf32> to vector<16x24xf32>
    %11 = arith.subf %10, %7 : vector<16x24xf32>
    %cst_10 = arith.constant -9.99999971E-10 : f32
    %12 = vector.broadcast %cst_10 : f32 to vector<16x24xf32>
    %13 = arith.minimumf %11, %12 : vector<16x24xf32>
    %cst_11 = arith.constant 0.000000e+00 : f32
    %14 = vector.broadcast %cst_11 : f32 to vector<16x24xf32>
    %15 = arith.subf %14, %7 : vector<16x24xf32>
    %16 = arith.divf %15, %13 : vector<16x24xf32>
    %cst_12 = arith.constant 0.000000e+00 : f32
    %17 = vector.broadcast %cst_12 : f32 to vector<16x24xf32>
    %18 = arith.select %9, %16, %17 : vector<16x24xi1>, vector<16x24xf32>
    %cst_13 = arith.constant dense<0xFF800000> : vector<16xf32>
    %19 = vector.multi_reduction <maximumf>, %18, %cst_13 [1] : vector<16x24xf32> to vector<16xf32>
    %20 = vector.shape_cast %19 : vector<16xf32> to vector<16x1xf32>
    %21 = vector.broadcast %4 : vector<1x32xf32> to vector<16x32xf32>
    %22 = arith.subf %21, %0 : vector<16x32xf32>
    %23 = vector.broadcast %20 : vector<16x1xf32> to vector<16x32xf32>
    %24 = arith.mulf %23, %22 : vector<16x32xf32>
    %25 = arith.addf %0, %24 : vector<16x32xf32>
    %c0_14 = arith.constant 0 : index
    %c0_15 = arith.constant 0 : index
    %26 = vector.load %arg6[%c0_14, %c0_15] : memref<16x32xf32, #tpu.memory_space<vmem>>, vector<16x32xf32>
    tpu.vector_store %arg6[%c0_14, %c0_15], %25 {strides = array<i32>} : memref<16x32xf32, #tpu.memory_space<vmem>>, vector<16x32xf32>,
    return
  }
  func.func @transform_0(%arg0: i32) -> (i32, i32) {
    %c0_i32 = arith.constant 0 : i32
    %c0_i32_0 = arith.constant 0 : i32
    return %arg0, %c0_i32 : i32, i32
  }
  func.func @transform_1(%arg0: i32) -> (i32, i32) {
    %c0_i32 = arith.constant 0 : i32
    %c0_i32_0 = arith.constant 0 : i32
    %c0_i32_1 = arith.constant 0 : i32
    return %c0_i32, %c0_i32_0 : i32, i32
  }
  func.func @transform_2(%arg0: i32) -> (i32, i32) {
    %c0_i32 = arith.constant 0 : i32
    %c0_i32_0 = arith.constant 0 : i32
    %c0_i32_1 = arith.constant 0 : i32
    return %c0_i32, %c0_i32_0 : i32, i32
  }
  func.func @transform_3(%arg0: i32) -> (i32, i32) {
    %c0_i32 = arith.constant 0 : i32
    %c0_i32_0 = arith.constant 0 : i32
    %c0_i32_1 = arith.constant 0 : i32
    return %c0_i32, %c0_i32_0 : i32, i32
  }
  func.func @transform_4(%arg0: i32) -> (i32, i32) {
    %c0_i32 = arith.constant 0 : i32
    %c0_i32_0 = arith.constant 0 : i32
    %c0_i32_1 = arith.constant 0 : i32
    return %c0_i32, %c0_i32_0 : i32, i32
  }
  func.func @transform_5(%arg0: i32) -> (i32, i32) {
    %c0_i32 = arith.constant 0 : i32
    %c0_i32_0 = arith.constant 0 : i32
    return %arg0, %c0_i32 : i32, i32
  }
}

</mosaic_0001>

<llo_original>
// kernel: tpu_custom_call.1
$region0: #{tpu_custom_call.1}
  #allocation0 [shape = 'u32[]', space=smem, size = 0x4, offset = 0x4, fixed_abs, tag = 'smem constant byte address 0x4 - core index']
  #allocation1 [shape = 'u32[144,128]{1,0:T(1,128)}', space=vmem, size = 0x12000, scoped, tag = 'internal scratch']
  %s0 = inlined_call_operand.vmem [shape: f32[16,32], index: 0, kind: input, shape index: {}]
  %s1 = inlined_call_operand.vmem [shape: f32[32,24], index: 1, kind: input, shape index: {}]
  %s2 = inlined_call_operand.vmem [shape: f32[1,24], index: 2, kind: input, shape index: {}]
  %s3 = inlined_call_operand.vmem [shape: f32[1,24], index: 3, kind: input, shape index: {}]
  %s4 = inlined_call_operand.vmem [shape: f32[1,32], index: 4, kind: input, shape index: {}]
  %s5 = inlined_call_operand.hbm [shape: f32[16,32], index: 5, kind: output, shape index: {}]
  %s6 = sld [smem:[#allocation0]]
  $region30: #{tpu_custom_call.1} parent=0
    _
  %s8 = ssub.s32 1, %s6
  %s9 = scalar_select 0, %s8, %s6
  $region1: #{tpu_custom_call.1} parent=0
    #allocation2 [shape = 'u8[8192]{0}', space=vmem, size = 0x2000, scoped, tag = 'output window, operand 0, single buffered']
    #allocation3 [shape = 's32[1]{0}', space=sflag, size = 0x4, scoped, tag = 'scoped memory for tpu_custom_call.1']
    %10 = vsyncpa [#allocation3], 0
    // Predicated region
    $region2: #{tpu_custom_call.1} parent=1 // pred_check
      _
    $region3: #{tpu_custom_call.1} parent=1 // pred_check_branch
      %12 = sbr.rel (0) target = $region5
    $region4: #{tpu_custom_call.1} parent=1 // pred_region
      _
    $region5: #{tpu_custom_call.1} parent=1 // pred_fallthru
      _
    // Predicated region
    $region6: #{tpu_custom_call.1} parent=1 // pred_check
      _
    $region7: #{tpu_custom_call.1} parent=1 // pred_check_branch
      %14 = sbr.rel (0) target = $region9
    $region8: #{tpu_custom_call.1} parent=1 // pred_region
      _
    $region9: #{tpu_custom_call.1} parent=1 // pred_fallthru
      _
    // Predicated region
    $region10: #{tpu_custom_call.1} parent=1 // pred_check
      _
    $region11: #{tpu_custom_call.1} parent=1 // pred_check_branch
      %16 = sbr.rel (0) target = $region13
    $region12: #{tpu_custom_call.1} parent=1 // pred_region
      _
    $region13: #{tpu_custom_call.1} parent=1 // pred_fallthru
      _
    // Predicated region
    $region14: #{tpu_custom_call.1} parent=1 // pred_check
      _
    $region15: #{tpu_custom_call.1} parent=1 // pred_check_branch
      %18 = sbr.rel (0) target = $region17
    $region16: #{tpu_custom_call.1} parent=1 // pred_region
      _
    $region17: #{tpu_custom_call.1} parent=1 // pred_fallthru
      _
    // Predicated region
    $region18: #{tpu_custom_call.1} parent=1 // pred_check
      _
    $region19: #{tpu_custom_call.1} parent=1 // pred_check_branch
      %20 = sbr.rel (0) target = $region21
    $region20: #{tpu_custom_call.1} parent=1 // pred_region
      _
    $region21: #{tpu_custom_call.1} parent=1 // pred_fallthru
      _
    %v21 = vld [vmem:[%s0] sm:$0xff]
    %v22 = vld [vmem:[%s0 + $0x8] sm:$0xff]
    %v23 = vld [vmem:[%s1] sm:$0xff]
    %v24 = vld [vmem:[%s1 + $0x8] sm:$0xff]
    %v25 = vld [vmem:[%s1 + $0x10] sm:$0xff]
    %v26 = vld [vmem:[%s1 + $0x18] sm:$0xff]
    %v27 = vld [vmem:[%s2] sm:$0x1]
    %v28 = vld [vmem:[%s3] sm:$0x1]
    %v29 = vld [vmem:[%s4] sm:$0x1]
    %vm30 = vcmask 261120
    %v32 = vsel %vm30, %v21, 0
    %v35 = vsel %vm30, %v22, 0
    %37 = vmatprep.subr.mxu0 0.0
    %38 = vmatpush1.msra.mxu0 %v23
    %39 = vmatprep.subr.mxu0 0.0
    %40 = vmatpush1.msra.mxu0 %v24
    %41 = vmatprep.subr.mxu0 0.0
    %42 = vmatpush1.msra.mxu0 %v25
    %43 = vmatprep.subr.mxu0 0.0
    %44 = vmatpush1.msra.mxu0 %v26
    %45 = vmatprep.subr.mxu0 0.0
    %46 = vmatpush1.msra.mxu0 0.0
    %47 = vmatprep.subr.mxu0 0.0
    %48 = vmatpush1.msra.mxu0 0.0
    %49 = vmatprep.subr.mxu0 0.0
    %50 = vmatpush1.msra.mxu0 0.0
    %51 = vmatprep.subr.mxu0 0.0
    %52 = vmatpush1.msra.mxu0 0.0
    %53 = vmatprep.subr.mxu0 0.0
    %54 = vmatpush1.msra.mxu0 0.0
    %55 = vmatprep.subr.mxu0 0.0
    %56 = vmatpush1.msra.mxu0 0.0
    %57 = vmatprep.subr.mxu0 0.0
    %58 = vmatpush1.msra.mxu0 0.0
    %59 = vmatprep.subr.mxu0 0.0
    %60 = vmatpush1.msra.mxu0 0.0
    %61 = vmatprep.subr.mxu0 0.0
    %62 = vmatpush1.msra.mxu0 0.0
    %63 = vmatprep.subr.mxu0 0.0
    %64 = vmatpush1.msra.mxu0 0.0
    %65 = vmatprep.subr.mxu0 0.0
    %66 = vmatpush1.msra.mxu0 0.0
    %67 = vmatprep.subr.mxu0 0.0
    %68 = vmatpush1.msra.mxu0 0.0
    %69 = vmatprep.subr.mxu0 0.0
    %70 = vmatpush1.msra.mxu0 0.0
    %71 = vmatprep.subr.mxu0 0.0
    %72 = vmatpush1.msra.mxu0 0.0
    %73 = vmatprep.subr.mxu0 0.0
    %74 = vmatpush1.msra.mxu0 0.0
    %75 = vmatprep.subr.mxu0 0.0
    %76 = vmatpush1.msra.mxu0 0.0
    %77 = vmatprep.subr.mxu0 0.0
    %78 = vmatpush1.msra.mxu0 0.0
    %79 = vmatprep.subr.mxu0 0.0
    %80 = vmatpush1.msra.mxu0 0.0
    %81 = vmatprep.subr.mxu0 0.0
    %82 = vmatpush1.msra.mxu0 0.0
    %83 = vmatprep.subr.mxu0 0.0
    %84 = vmatpush1.msra.mxu0 0.0
    %85 = vmatprep.subr.mxu0 0.0
    %86 = vmatpush1.msra.mxu0 0.0
    %87 = vmatprep.subr.mxu0 0.0
    %88 = vmatpush1.msra.mxu0 0.0
    %89 = vmatprep.subr.mxu0 0.0
    %90 = vmatpush1.msra.mxu0 0.0
    %91 = vmatprep.subr.mxu0 0.0
    %92 = vmatpush1.msra.mxu0 0.0
    %93 = vmatprep.subr.mxu0 0.0
    %94 = vmatpush1.msra.mxu0 0.0
    %95 = vmatprep.subr.mxu0 0.0
    %96 = vmatpush1.msra.mxu0 0.0
    %97 = vmatprep.subr.mxu0 0.0
    %98 = vmatpush1.msra.mxu0 0.0
    %99 = vmatprep.subr.mxu0 0.0
    %100 = vmatpush1.msra.mxu0 0.0
    %101 = vmatprep.mubr.f32.mxu0 0.0
    %102 = vmatmul.mubr.f32.gmra.mrb[0].mxu0 %v32
    %v103 = vpop.f32.mrb[0].mxu0
    %v104 = vadd.f32 0.0, %v103
    %v105 = vpop.f32.mrb[0].mxu0
    %106 = vmatprep.mubr.f32.mxu0 0.0
    %107 = vmatmul.mubr.f32.gmra.mrb[0].mxu0 %v35
    %v108 = vpop.f32.mrb[0].mxu0
    %v109 = vadd.f32 0.0, %v108
    %v110 = vpop.f32.mrb[0].mxu0
    %111 = vdwg.mxu0
    %v113 = vlaneseq
    %v114 = vshrl.u32 %v113, 7
    %v115 = vsub.s32 0, %v114
    %v116 = vrot.slane %v27, %v115
    %v118 = vsub.f32 %v104, %v116
    %v119 = vsub.f32 %v109, %v116
    %vm120 = vcmp.ge.f32.partialorder %v118, 0.0
    %vm121 = vcmp.ge.f32.partialorder %v119, 0.0
    %v123 = vlaneseq
    %v124 = vshrl.u32 %v123, 7
    %v125 = vsub.s32 0, %v124
    %v126 = vrot.slane %v28, %v125
    %v128 = vsub.f32 %v126, %v118
    %v129 = vsub.f32 %v126, %v119
    %v130 = vmin.f32 %v128, -1e-09
    %v131 = vmin.f32 %v129, -1e-09
    %v132 = vsub.f32 0.0, %v118
    %v133 = vsub.f32 0.0, %v119
    %v134 = vrcp.pop %v130
    %v135 = vmul.f32 %v132, %v134
    %v136 = vrcp.pop %v131
    %v137 = vmul.f32 %v133, %v136
    %v138 = vsel %vm120, %v135, 0.0
    %v139 = vsel %vm121, %v137, 0.0
    %vm140 = vcmask 195584
    %v141 = vsel %vm140, %v138, -inf
    %142 = vmax.xlane.f32.xlu0 %v141
    %v143 = vpop.xlane.xlu0 %142
    %v144 = vsel %vm140, %v139, -inf
    %145 = vmax.xlane.f32.xlu0 %v144
    %v146 = vpop.xlane.xlu0 %145
    %v148 = vlaneseq
    %v149 = vshrl.u32 %v148, 7
    %v150 = vsub.s32 0, %v149
    %v151 = vrot.slane %v29, %v150
    %v153 = vsub.f32 %v151, %v21
    %v154 = vsub.f32 %v151, %v22
    %v155 = vmul.f32 %v143, %v153
    %v156 = vmul.f32 %v146, %v154
    %v157 = vadd.f32 %v21, %v155
    %v158 = vadd.f32 %v22, %v156
    %159 = vst.msk [vmem:[#allocation2] sm:$0xff] %vm30, %v157
    %160 = vst.msk [vmem:[#allocation2 + $0x8] sm:$0xff] %vm30, %v158
    // Predicated region
    $region22: #{tpu_custom_call.1} parent=1 // pred_check
      _
    $region23: #{tpu_custom_call.1} parent=1 // pred_check_branch
      %162 = sbr.rel (0) target = $region25
    $region24: #{tpu_custom_call.1} parent=1 // pred_region
      %s164 = ssub.s32 256, 256
      %165 = vsyncadd [#allocation3], %s164
      %s166 = sshll.u32 [#allocation2], 4
      %s167 = int_to_ptr.vmem [resolvable:$true] %s166
      %172 = dma.vmem_to_hbm [thread:$0]  %s167, 256, %s5, [#allocation3], 128, 128, 8
    $region25: #{tpu_custom_call.1} parent=1 // pred_fallthru
      _
    // Predicated region
    $region26: #{tpu_custom_call.1} parent=1 // pred_check
      _
    $region27: #{tpu_custom_call.1} parent=1 // pred_check_branch
      %174 = sbr.rel (0) target = $region29
    $region28: #{tpu_custom_call.1} parent=1 // pred_region
      %175 = dma.done [#allocation3], 256
    $region29: #{tpu_custom_call.1} parent=1 // pred_fallthru
      _
    %176 = vsyncpa [#allocation3], 1

</llo_original>
